<compile_context>
chip_gen: v5e
topology: v5e:2x2
jax: 0.10.0
libtpu: 0.0.40
codegen_flags: <defaults>
</compile_context>

<pallas_src>
import functools

import jax
import jax.numpy as jnp
from jax.experimental import pallas as pl
from jax.experimental.pallas import tpu as pltpu

LANES = 128
SUBLANES = 8


def _focal_math(x, t, *, alpha, gamma, logits, binary_targets):
    """Elementwise focal loss in f32 (VPU/EUP only)."""
    x = x.astype(jnp.float32)
    t = t.astype(jnp.float32)

    if logits:
        # F.binary_cross_entropy_with_logits (numerically stable form)
        bce = jnp.maximum(x, 0.0) - x * t + jnp.log1p(jnp.exp(-jnp.abs(x)))
        pt = jnp.exp(-bce)
    else:
        # F.binary_cross_entropy: PyTorch clamps the log terms at -100
        # (the clamps are load-bearing: they prevent 0 * (-inf) = NaN).
        log_p = jnp.maximum(jnp.log(x), -100.0)
        log_1mp = jnp.maximum(jnp.log1p(-x), -100.0)
        bce = -(t * log_p + (1.0 - t) * log_1mp)
        if binary_targets:
            # For t in {0,1}: exp(-bce) == p**t * (1-p)**(1-t) == (t ? p : 1-p)
            # -> one VPU select instead of an EUP exp per element.
            pt = jnp.where(t > 0.5, x, 1.0 - x)
        else:
            pt = jnp.exp(-bce)

    q = 1.0 - pt
    g = float(gamma)
    if g.is_integer() and 0 <= int(g) <= 8:
        gi = int(g)
        if gi == 0:
            w = jnp.ones_like(bce)
        else:
            w = q
            for _ in range(gi - 1):      # gamma=2 -> q*q (no EUP pow)
                w = w * q
    else:
        w = q ** g                        # non-integer gamma: EUP pow fallback

    f = w * bce
    if float(alpha) != 1.0:
        f = float(alpha) * f
    return f


def _focal_sum_kernel(x_ref, t_ref, out_ref, *, alpha, gamma, logits,
                      binary_targets, n, row_tile, need_mask):
    f = _focal_math(x_ref[...], t_ref[...], alpha=alpha, gamma=gamma,
                    logits=logits, binary_targets=binary_targets)
    if need_mask:
        # Zero contributions beyond the true element count (lane pad and/or
        # out-of-bounds rows of a ragged last block).
        i = pl.program_id(0)
        row = jax.lax.broadcasted_iota(jnp.int32, f.shape, 0)
        lane = jax.lax.broadcasted_iota(jnp.int32, f.shape, 1)
        idx = (i * row_tile + row) * LANES + lane
        f = jnp.where(idx < n, f, 0.0)
    # Lane-resident partial sum: fold row groups of 8 with pure VPU adds.
    partial = f.reshape(row_tile // SUBLANES, SUBLANES, LANES).sum(axis=0)
    out_ref[...] = partial[None]          # (1, 8, 128) block, lane-dense


def _focal_elem_kernel(x_ref, t_ref, out_ref, *, alpha, gamma, logits,
                       binary_targets):
    f = _focal_math(x_ref[...], t_ref[...], alpha=alpha, gamma=gamma,
                    logits=logits, binary_targets=binary_targets)
    out_ref[...] = f.astype(out_ref.dtype)


def _prepare_slabs(inputs, targets, row_tile):
    """Flatten to (rows, 128) slabs; pad only when unavoidable."""
    n = inputs.size
    flat_x = inputs.reshape(-1)
    flat_t = targets.reshape(-1)

    chunk = SUBLANES * LANES              # 1024 elements
    padded = pl.cdiv(n, chunk) * chunk
    if padded != n:
        # Bounded (<1024 element) pad; only hit for non-aligned sizes.  Pad
        # values are irrelevant: the kernel masks / the wrapper slices them.
        flat_x = jnp.pad(flat_x, (0, padded - n))
        flat_t = jnp.pad(flat_t, (0, padded - n))

    rows = padded // LANES                # multiple of 8
    rt = min(int(row_tile), rows)
    rt = max(SUBLANES, (rt // SUBLANES) * SUBLANES)
    num_blocks = pl.cdiv(rows, rt)
    need_mask = (padded != n) or (rows % rt != 0)

    x2d = flat_x.reshape(rows, LANES)
    t2d = flat_t.reshape(rows, LANES)
    return x2d, t2d, n, rows, rt, num_blocks, need_mask


def focal_loss(inputs, targets, *, alpha=1.0, gamma=2.0, logits=False,
               reduce=True, binary_targets=True, row_tile=512):
    """Focal loss matching the PyTorch FocalLoss module.

    binary_targets=True assumes targets are in {0, 1} (the cldice use case)
    and replaces pt = exp(-bce) by a select on p in the non-logits path
    (mathematically identical for binary targets, one fewer transcendental).
    Set binary_targets=False for soft targets.
    """
    assert inputs.shape == targets.shape
    x2d, t2d, n, rows, rt, num_blocks, need_mask = _prepare_slabs(
        inputs, targets, row_tile)

    in_specs = [
        pl.BlockSpec((rt, LANES), lambda i: (i, 0)),
        pl.BlockSpec((rt, LANES), lambda i: (i, 0)),
    ]
    cparams = pltpu.CompilerParams(dimension_semantics=("parallel",))

    if reduce:
        kernel = functools.partial(
            _focal_sum_kernel,
            alpha=float(alpha), gamma=float(gamma), logits=bool(logits),
            binary_targets=bool(binary_targets),
            n=int(n), row_tile=int(rt), need_mask=bool(need_mask))
        partials = pl.pallas_call(
            kernel,
            out_shape=jax.ShapeDtypeStruct((num_blocks, SUBLANES, LANES),
                                           jnp.float32),
            grid_spec=pltpu.PrefetchScalarGridSpec(
                num_scalar_prefetch=0,
                grid=(num_blocks,),
                in_specs=in_specs,
                out_specs=pl.BlockSpec((1, SUBLANES, LANES),
                                       lambda i: (i, 0, 0)),
            ),
            compiler_params=cparams,
        )(x2d, t2d)
        # Tiny epilogue: cross-lane finish of num_blocks*8*128 partials.
        return jnp.sum(partials) * (1.0 / float(n))

    # reduce=False: per-element focal loss, original shape.
    kernel = functools.partial(
        _focal_elem_kernel,
        alpha=float(alpha), gamma=float(gamma), logits=bool(logits),
        binary_targets=bool(binary_targets))
    out2d = pl.pallas_call(
        kernel,
        out_shape=jax.ShapeDtypeStruct((rows, LANES), inputs.dtype),
        grid_spec=pltpu.PrefetchScalarGridSpec(
            num_scalar_prefetch=0,
            grid=(num_blocks,),
            in_specs=in_specs,
            out_specs=pl.BlockSpec((rt, LANES), lambda i: (i, 0)),
        ),
        compiler_params=cparams,
    )(x2d, t2d)
    return out2d.reshape(-1)[:n].reshape(inputs.shape)


# ----------------------------- pure-JAX reference -----------------------------

def focal_loss_ref(inputs, targets, alpha=1.0, gamma=2.0, logits=False,
                   reduce=True):
    x = inputs.astype(jnp.float32)
    t = targets.astype(jnp.float32)
    if logits:
        bce = jnp.maximum(x, 0.0) - x * t + jnp.log1p(jnp.exp(-jnp.abs(x)))
    else:
        log_p = jnp.maximum(jnp.log(x), -100.0)
        log_1mp = jnp.maximum(jnp.log1p(-x), -100.0)
        bce = -(t * log_p + (1.0 - t) * log_1mp)
    pt = jnp.exp(-bce)
    f = alpha * (1.0 - pt) ** gamma * bce
    return jnp.mean(f) if reduce else f


if __name__ == "__main__":
    key = jax.random.PRNGKey(0)
    k1, k2 = jax.random.split(key)
    shape = (2, 4, 16, 16)  # NCHW as in the PyTorch usage
    x = jax.nn.sigmoid(jax.random.normal(k1, shape, dtype=jnp.float32))
    t = (jax.random.uniform(k2, shape) > 0.5).astype(jnp.float32)

    # default path: probabilities, reduced mean
    out = focal_loss(x, t, alpha=1.0, gamma=2.0, logits=False, reduce=True)
    out = jax.block_until_ready(out)
    ref = focal_loss_ref(x, t)
    assert jnp.allclose(out, ref, rtol=1e-5, atol=1e-6), (out, ref)

    # logits path (pad/mask-safe now)
    xl = jax.random.normal(k1, shape, dtype=jnp.float32)
    out_l = jax.block_until_ready(
        focal_loss(xl, t, logits=True, reduce=True))
    ref_l = focal_loss_ref(xl, t, logits=True)
    assert jnp.allclose(out_l, ref_l, rtol=1e-5, atol=1e-6), (out_l, ref_l)

    # unreduced (elementwise) path
    out_e = jax.block_until_ready(focal_loss(x, t, reduce=False))
    ref_e = focal_loss_ref(x, t, reduce=False)
    assert out_e.shape == shape
    assert jnp.allclose(out_e, ref_e, rtol=1e-5, atol=1e-6)

    # non-aligned size exercises the in-kernel tail mask
    xs = jax.nn.sigmoid(jax.random.normal(k1, (3, 5, 7), dtype=jnp.float32))
    ts = (jax.random.uniform(k2, (3, 5, 7)) > 0.5).astype(jnp.float32)
    out_s = jax.block_until_ready(focal_loss(xs, ts))
    ref_s = focal_loss_ref(xs, ts)
    assert jnp.allclose(out_s, ref_s, rtol=1e-5, atol=1e-6), (out_s, ref_s)

    print("KERNEL_OK")
</pallas_src>

<mosaic_0001>
module attributes {stable_mosaic.version = 11 : i64} {
  func.func @_focal_sum_kernel(%arg0: i32, %arg1: memref<16x128xf32, #tpu.memory_space<vmem>>, %arg2: memref<16x128xf32, #tpu.memory_space<vmem>>, %arg3: memref<1x8x128xf32, #tpu.memory_space<vmem>>) attributes {dimension_semantics = [#tpu.dimension_semantics<parallel>], iteration_bounds = array<i64: 1>, scalar_prefetch = 0 : i64, scratch_operands = 0 : i64, tpu.core_type = #tpu.core_type<tc>, window_params = [{transform_indices = @transform_0, window_bounds = array<i64: 16, 128>}, {transform_indices = @transform_1, window_bounds = array<i64: 16, 128>}, {transform_indices = @transform_2, window_bounds = array<i64: 1, 8, 128>}]} {
    %c0 = arith.constant 0 : index
    %c0_0 = arith.constant 0 : index
    %0 = vector.load %arg1[%c0, %c0_0] : memref<16x128xf32, #tpu.memory_space<vmem>>, vector<16x128xf32>
    %c0_1 = arith.constant 0 : index
    %c0_2 = arith.constant 0 : index
    %1 = vector.load %arg2[%c0_1, %c0_2] : memref<16x128xf32, #tpu.memory_space<vmem>>, vector<16x128xf32>
    %2 = math.log %0 : vector<16x128xf32>
    %cst = arith.constant -1.000000e+02 : f32
    %3 = vector.broadcast %cst : f32 to vector<16x128xf32>
    %4 = arith.maximumf %2, %3 : vector<16x128xf32>
    %cst_3 = arith.constant 0.000000e+00 : f32
    %5 = vector.broadcast %cst_3 : f32 to vector<16x128xf32>
    %6 = arith.subf %5, %0 : vector<16x128xf32>
    %7 = math.log1p %6 : vector<16x128xf32>
    %cst_4 = arith.constant -1.000000e+02 : f32
    %8 = vector.broadcast %cst_4 : f32 to vector<16x128xf32>
    %9 = arith.maximumf %7, %8 : vector<16x128xf32>
    %10 = arith.mulf %1, %4 : vector<16x128xf32>
    %cst_5 = arith.constant 1.000000e+00 : f32
    %11 = vector.broadcast %cst_5 : f32 to vector<16x128xf32>
    %12 = arith.subf %11, %1 : vector<16x128xf32>
    %13 = arith.mulf %12, %9 : vector<16x128xf32>
    %14 = arith.addf %10, %13 : vector<16x128xf32>
    %cst_6 = arith.constant 0.000000e+00 : f32
    %15 = vector.broadcast %cst_6 : f32 to vector<16x128xf32>
    %16 = arith.subf %15, %14 : vector<16x128xf32>
    %cst_7 = arith.constant 5.000000e-01 : f32
    %17 = vector.broadcast %cst_7 : f32 to vector<16x128xf32>
    %18 = arith.cmpf ogt, %1, %17 : vector<16x128xf32>
    %cst_8 = arith.constant 1.000000e+00 : f32
    %19 = vector.broadcast %cst_8 : f32 to vector<16x128xf32>
    %20 = arith.subf %19, %0 : vector<16x128xf32>
    %21 = arith.select %18, %0, %20 : vector<16x128xi1>, vector<16x128xf32>
    %cst_9 = arith.constant 1.000000e+00 : f32
    %22 = vector.broadcast %cst_9 : f32 to vector<16x128xf32>
    %23 = arith.subf %22, %21 : vector<16x128xf32>
    %24 = arith.mulf %23, %23 : vector<16x128xf32>
    %25 = arith.mulf %24, %16 : vector<16x128xf32>
    %26 = vector.shape_cast %25 : vector<16x128xf32> to vector<2x8x128xf32>
    %cst_10 = arith.constant dense<0.000000e+00> : vector<8x128xf32>
    %27 = vector.multi_reduction <add>, %26, %cst_10 [0] : vector<2x8x128xf32> to vector<8x128xf32>
    %28 = vector.shape_cast %27 : vector<8x128xf32> to vector<1x8x128xf32>
    %c0_11 = arith.constant 0 : index
    %c0_12 = arith.constant 0 : index
    %c0_13 = arith.constant 0 : index
    %29 = vector.load %arg3[%c0_11, %c0_12, %c0_13] : memref<1x8x128xf32, #tpu.memory_space<vmem>>, vector<1x8x128xf32>
    tpu.vector_store %arg3[%c0_11, %c0_12, %c0_13], %28 {strides = array<i32>} : memref<1x8x128xf32, #tpu.memory_space<vmem>>, vector<1x8x128xf32>,
    return
  }
  func.func @transform_0(%arg0: i32) -> (i32, i32) {
    %c0_i32 = arith.constant 0 : i32
    %c0_i32_0 = arith.constant 0 : i32
    return %arg0, %c0_i32 : i32, i32
  }
  func.func @transform_1(%arg0: i32) -> (i32, i32) {
    %c0_i32 = arith.constant 0 : i32
    %c0_i32_0 = arith.constant 0 : i32
    return %arg0, %c0_i32 : i32, i32
  }
  func.func @transform_2(%arg0: i32) -> (i32, i32, i32) {
    %c0_i32 = arith.constant 0 : i32
    %c0_i32_0 = arith.constant 0 : i32
    %c0_i32_1 = arith.constant 0 : i32
    return %arg0, %c0_i32, %c0_i32_0 : i32, i32, i32
  }
}

</mosaic_0001>

<llo_original>
// kernel: tpu_custom_call.1
$region0: #{tpu_custom_call.1}
  #allocation0 [shape = 'u32[]', space=smem, size = 0x4, offset = 0x4, fixed_abs, tag = 'smem constant byte address 0x4 - core index']
  #allocation1 [shape = 'u32[72,128]{1,0:T(1,128)}', space=vmem, size = 0x9000, scoped, tag = 'internal scratch']
  %s0 = inlined_call_operand.hbm [shape: f32[16,128], index: 0, kind: input, shape index: {}]
  %s1 = inlined_call_operand.hbm [shape: f32[16,128], index: 1, kind: input, shape index: {}]
  %s2 = inlined_call_operand.hbm [shape: f32[1,8,128], index: 2, kind: output, shape index: {}]
  %s3 = sld [smem:[#allocation0]]
  $region26: #{tpu_custom_call.1} parent=0
    _
  %s5 = ssub.s32 1, %s3
  %s6 = scalar_select 0, %s5, %s3
  $region1: #{tpu_custom_call.1} parent=0
    #allocation2 [shape = 'u8[8192]{0}', space=vmem, size = 0x2000, scoped, tag = 'input window, operand 0, single buffered']
    #allocation3 [shape = 's32[1]{0}', space=sflag, size = 0x4, scoped, tag = 'scoped memory for tpu_custom_call.1']
    #allocation4 [shape = 's32[1]{0}', space=sflag, size = 0x4, scoped, tag = 'scoped memory for tpu_custom_call.1']
    #allocation5 [shape = 'u8[8192]{0}', space=vmem, size = 0x2000, scoped, tag = 'input window, operand 1, single buffered']
    #allocation6 [shape = 's32[1]{0}', space=sflag, size = 0x4, scoped, tag = 'scoped memory for tpu_custom_call.1']
    #allocation7 [shape = 'u8[4096]{0}', space=vmem, size = 0x1000, scoped, tag = 'output window, operand 0, single buffered']
    %7 = vsyncpa [#allocation3], 0
    %8 = vsyncpa [#allocation6], 0
    %9 = vsyncpa [#allocation4], 0
    // Predicated region
    $region2: #{tpu_custom_call.1} parent=1 // pred_check
      _
    $region3: #{tpu_custom_call.1} parent=1 // pred_check_branch
      %11 = sbr.rel (0) target = $region5
    $region4: #{tpu_custom_call.1} parent=1 // pred_region
      %13 = vsyncadd [#allocation3], 0
      %s14 = sshll.u32 %s0, 4
      %s15 = int_to_ptr.hbm [resolvable:$true] %s14
      %s16 = sshll.u32 [#allocation2], 4
      %s17 = int_to_ptr.vmem [resolvable:$true] %s16
      %22 = dma.hbm_to_vmem [thread:$0]  %s15, 256, %s17, [#allocation3], 128, 128, 8
    $region5: #{tpu_custom_call.1} parent=1 // pred_fallthru
      _
    // Predicated region
    $region6: #{tpu_custom_call.1} parent=1 // pred_check
      _
    $region7: #{tpu_custom_call.1} parent=1 // pred_check_branch
      %24 = sbr.rel (0) target = $region9
    $region8: #{tpu_custom_call.1} parent=1 // pred_region
      %26 = vsyncadd [#allocation6], 0
      %s27 = sshll.u32 %s1, 4
      %s28 = int_to_ptr.hbm [resolvable:$true] %s27
      %s29 = sshll.u32 [#allocation5], 4
      %s30 = int_to_ptr.vmem [resolvable:$true] %s29
      %35 = dma.hbm_to_vmem [thread:$0]  %s28, 256, %s30, [#allocation6], 128, 128, 8
    $region9: #{tpu_custom_call.1} parent=1 // pred_fallthru
      _
    // Predicated region
    $region10: #{tpu_custom_call.1} parent=1 // pred_check
      _
    $region11: #{tpu_custom_call.1} parent=1 // pred_check_branch
      %37 = sbr.rel (0) target = $region13
    $region12: #{tpu_custom_call.1} parent=1 // pred_region
      %39 = dma.done [#allocation3], 256
    $region13: #{tpu_custom_call.1} parent=1 // pred_fallthru
      _
    // Predicated region
    $region14: #{tpu_custom_call.1} parent=1 // pred_check
      _
    $region15: #{tpu_custom_call.1} parent=1 // pred_check_branch
      %41 = sbr.rel (0) target = $region17
    $region16: #{tpu_custom_call.1} parent=1 // pred_region
      %43 = dma.done [#allocation6], 256
    $region17: #{tpu_custom_call.1} parent=1 // pred_fallthru
      _
    %v44 = vld [vmem:[#allocation2] sm:$0xff]
    %v45 = vld [vmem:[#allocation2 + $0x8] sm:$0xff]
    %v46 = vld [vmem:[#allocation5] sm:$0xff]
    %v47 = vld [vmem:[#allocation5 + $0x8] sm:$0xff]
    %v48 = vlog2.pop %v44
    %v49 = vmul.f32 %v48, 0.6931472
    %v50 = vlog2.pop %v45
    %v51 = vmul.f32 %v50, 0.6931472
    %v52 = vmax.f32 %v49, -100.0
    %v53 = vmax.f32 %v51, -100.0
    %v54 = vsub.f32 0.0, %v44
    %v55 = vsub.f32 0.0, %v45
    %v56 = vadd.f32 %v54, 1.0
    %v57 = vlog2.pop %v56
    %v58 = vmul.f32 %v57, 0.6931472
    %v59 = vmul.f32 -0.5, %v54
    %v60 = vadd.f32 %v59, 1.0
    %v61 = vmul.f32 %v60, %v54
    %v62 = vand.u32 2147483647, %v54
    %vm63 = vcmp.lt.f32.partialorder %v62, 0.0004427343
    %v64 = vsel %vm63, %v61, %v58
    %v65 = vadd.f32 %v55, 1.0
    %v66 = vlog2.pop %v65
    %v67 = vmul.f32 %v66, 0.6931472
    %v68 = vmul.f32 -0.5, %v55
    %v69 = vadd.f32 %v68, 1.0
    %v70 = vmul.f32 %v69, %v55
    %v71 = vand.u32 2147483647, %v55
    %vm72 = vcmp.lt.f32.partialorder %v71, 0.0004427343
    %v73 = vsel %vm72, %v70, %v67
    %v74 = vmax.f32 %v64, -100.0
    %v75 = vmax.f32 %v73, -100.0
    %v76 = vmul.f32 %v46, %v52
    %v77 = vmul.f32 %v47, %v53
    %v78 = vsub.f32 1.0, %v46
    %v79 = vsub.f32 1.0, %v47
    %v80 = vmul.f32 %v78, %v74
    %v81 = vmul.f32 %v79, %v75
    %v82 = vadd.f32 %v76, %v80
    %v83 = vadd.f32 %v77, %v81
    %v84 = vsub.f32 0.0, %v82
    %v85 = vsub.f32 0.0, %v83
    %vm86 = vcmp.gt.f32.partialorder %v46, 0.5
    %vm87 = vcmp.gt.f32.partialorder %v47, 0.5
    %v88 = vsub.f32 1.0, %v44
    %v89 = vsub.f32 1.0, %v45
    %v90 = vsel %vm86, %v44, %v88
    %v91 = vsel %vm87, %v45, %v89
    %v92 = vsub.f32 1.0, %v90
    %v93 = vsub.f32 1.0, %v91
    %v94 = vmul.f32 %v92, %v92
    %v95 = vmul.f32 %v93, %v93
    %v96 = vmul.f32 %v94, %v84
    %v97 = vmul.f32 %v95, %v85
    %v98 = vadd.f32 %v96, %v97
    %99 = vst [vmem:[#allocation7] sm:$0xff] %v98
    // Predicated region
    $region18: #{tpu_custom_call.1} parent=1 // pred_check
      _
    $region19: #{tpu_custom_call.1} parent=1 // pred_check_branch
      %101 = sbr.rel (0) target = $region21
    $region20: #{tpu_custom_call.1} parent=1 // pred_region
      %103 = vsyncadd [#allocation4], 0
      %s105 = sshll.u32 [#allocation7], 4
      %s106 = int_to_ptr.vmem [resolvable:$true] %s105
      %s107 = sshll.u32 %s2, 4
      %s108 = int_to_ptr.hbm [resolvable:$true] %s107
      %110 = dma.vmem_to_hbm [thread:$0]  %s106, 128, %s108, [#allocation4]
    $region21: #{tpu_custom_call.1} parent=1 // pred_fallthru
      _
    // Predicated region
    $region22: #{tpu_custom_call.1} parent=1 // pred_check
      _
    $region23: #{tpu_custom_call.1} parent=1 // pred_check_branch
      %112 = sbr.rel (0) target = $region25
    $region24: #{tpu_custom_call.1} parent=1 // pred_region
      %114 = dma.done [#allocation4], 128
    $region25: #{tpu_custom_call.1} parent=1 // pred_fallthru
      _
    %115 = vsyncpa [#allocation3], 1
    %116 = vsyncpa [#allocation6], 1
    %117 = vsyncpa [#allocation4], 1

</llo_original>
